<compile_context>
chip_gen: v7x
topology: tpu7x:2x2x1
jax: 0.10.0
libtpu: 0.0.40
codegen_flags: <defaults>
</compile_context>

<pallas_src>
import functools
import math

import jax
import jax.numpy as jnp
from jax.experimental import pallas as pl
from jax.experimental.pallas import tpu as pltpu

_NEG = float(jnp.finfo(jnp.float32).min)  # finite "-inf" (avoids inf-inf NaNs)
_MAX_TILE_D = 2048  # keeps per-lane (m, s) carries + one chunk well inside 64 vregs


def _round_up(x: int, m: int) -> int:
    return -(-x // m) * m


def _erm_kernel(x_ref, o_ref, m_ref, s_ref, *, a, n_total, log_n,
                tile_n, chunk, has_rem):
    """Streaming online logsumexp of (-a * x) over the N (sublane) axis.

    x_ref : (tile_n, tile_d) input block (native dtype)
    o_ref : (1, tile_d)      output block (f32), resident across the N axis
    m_ref : (1, tile_d)      running per-lane max of (-a*x)         [scratch]
    s_ref : (1, tile_d)      running per-lane sum of exp(-a*x - m)  [scratch]
    """
    k = pl.program_id(1)            # reduction axis (last grid dim, "arbitrary")
    nb = pl.num_programs(1)
    n_chunks = tile_n // chunk
    neg_a = jnp.float32(-a)

    @pl.when(k == 0)
    def _init():
        m_ref[...] = jnp.full_like(m_ref, _NEG)
        s_ref[...] = jnp.zeros_like(s_ref)

    def _chunk_update(c, carry, *, masked):
        m_run, s_run = carry
        r0 = pl.multiple_of(c * chunk, chunk)
        x = x_ref[pl.ds(r0, chunk), :].astype(jnp.float32)
        z = neg_a * x
        if masked:
            rows = (jax.lax.broadcasted_iota(jnp.int32, (chunk, 1), 0)
                    + k * tile_n + c * chunk)
            valid = rows < n_total
            z = jnp.where(valid, z, _NEG)
        m_new = jnp.maximum(m_run, jnp.max(z, axis=0, keepdims=True))
        e = jnp.exp(z - m_new)                       # EUP
        if masked:
            # Needed when all valid z sit near float32 min: exp(_NEG - m_new)
            # may not underflow to exactly zero there.
            e = jnp.where(valid, e, 0.0)
        p = jnp.sum(e, axis=0, keepdims=True)        # sublane reduce
        s_run = s_run * jnp.exp(m_run - m_new) + p
        return m_new, s_run

    def _run_block(masked):
        carry0 = (m_ref[...], s_ref[...])
        unroll = n_chunks if n_chunks <= 8 else 2
        m_run, s_run = jax.lax.fori_loop(
            0, n_chunks, functools.partial(_chunk_update, masked=masked),
            carry0, unroll=unroll)
        m_ref[...] = m_run
        s_ref[...] = s_run

    if has_rem:
        @pl.when(k < nb - 1)
        def _steady():
            _run_block(masked=False)

        @pl.when(k == nb - 1)
        def _tail():
            _run_block(masked=True)
    else:
        _run_block(masked=False)

    @pl.when(k == nb - 1)
    def _finalize():
        # Padding lanes of a partial D tile hold garbage; log/exp results are
        # strictly per-lane (never reduced across lanes) and are discarded at
        # writeback, so this is harmless.
        o_ref[...] = ((m_ref[...] + jnp.log(s_ref[...]) - log_n)
                      * (1.0 / a)).astype(o_ref.dtype)


def _pick_tiles(n, d, itemsize, tile_n, tile_d):
    n_pad = _round_up(n, 32)
    d_pad = _round_up(d, 128)
    budget = (4 * 1024 * 1024) // itemsize      # elements per input block (~4 MiB)

    if tile_d is not None:
        tile_d = min(_round_up(tile_d, 128), d_pad)
    if tile_n is not None:
        tile_n = min(_round_up(tile_n, 32), n_pad)

    # Whole problem fits one comfortably-sized block.
    if (tile_d is None and tile_n is None
            and d_pad <= _MAX_TILE_D and n_pad * d_pad <= budget):
        return n_pad, d_pad

    if tile_d is None:
        tile_d = min(d_pad, 1024)
        # Keep >= 2 D tiles so both v7x TensorCores get work on the parallel axis.
        if tile_d >= d_pad and d_pad >= 256:
            tile_d = _round_up(-(-d_pad // 2), 128)
    if tile_n is None:
        tile_n = min(n_pad, max(256, (budget // tile_d) // 32 * 32))
        # N fits in one block: spend the leftover budget widening the D tile.
        if tile_n >= n_pad and tile_n * tile_d < budget and d_pad > tile_d:
            wide = min(_round_up(budget // tile_n, 128), _MAX_TILE_D)
            if d_pad >= 256:
                wide = min(wide, _round_up(-(-d_pad // 2), 128))
            tile_d = min(d_pad, max(tile_d, wide))
    return tile_n, tile_d


def entropic_risk_measure(x: jax.Array, a: float = 1.0,
                          tile_n: int | None = None,
                          tile_d: int | None = None) -> jax.Array:
    if not a > 0:
        raise ValueError("Risk aversion coefficient should be positive.")

    x = jnp.asarray(x)
    n = int(x.shape[0])
    out_dims = x.shape[1:]
    d = math.prod(out_dims) if out_dims else 1

    # 2-D view in the native dtype: no padding, no cast, no extra HBM traffic.
    x2 = x.reshape(n, d)
    itemsize = jnp.dtype(x2.dtype).itemsize

    tile_n, tile_d = _pick_tiles(n, d, itemsize, tile_n, tile_d)

    # Streaming chunk height: ~<=32K elements per chunk, power-of-two sublanes
    # (always divides tile_n, which is a multiple of 32).
    chunk = 32
    while chunk > 8 and chunk * tile_d > 32 * 1024:
        chunk //= 2

    grid = (pl.cdiv(d, tile_d), pl.cdiv(n, tile_n))  # reduction axis last
    has_rem = (n % tile_n) != 0

    kernel = functools.partial(
        _erm_kernel, a=float(a), n_total=n, log_n=float(math.log(n)),
        tile_n=tile_n, chunk=chunk, has_rem=has_rem)

    # VMEM: double-buffered input block + output block + scratch + margin.
    in_block_bytes = tile_n * tile_d * itemsize
    vmem_limit = int(min(48 << 20,
                         max(16 << 20,
                             2 * in_block_bytes + 8 * tile_d * 4 + (4 << 20))))

    out = pl.pallas_call(
        kernel,
        out_shape=jax.ShapeDtypeStruct((1, d), jnp.float32),
        grid_spec=pltpu.PrefetchScalarGridSpec(
            num_scalar_prefetch=0,
            grid=grid,
            in_specs=[pl.BlockSpec((tile_n, tile_d), lambda j, k: (k, j))],
            out_specs=pl.BlockSpec((1, tile_d), lambda j, k: (0, j)),
            scratch_shapes=[pltpu.VMEM((1, tile_d), jnp.float32),   # running max
                            pltpu.VMEM((1, tile_d), jnp.float32)],  # running sum
        ),
        compiler_params=pltpu.CompilerParams(
            dimension_semantics=("parallel", "arbitrary"),
            vmem_limit_bytes=vmem_limit),
    )(x2)

    res = out[0].reshape(out_dims)
    out_dtype = x.dtype if jnp.issubdtype(x.dtype, jnp.floating) else jnp.float32
    return res.astype(out_dtype)


class EntropicRiskMeasure:
    """JAX/Pallas port of pfhedge.nn.EntropicRiskMeasure."""

    def __init__(self, a: float = 1.0):
        if not a > 0:
            raise ValueError("Risk aversion coefficient should be positive.")
        self.a = a

    def __call__(self, x: jax.Array) -> jax.Array:
        return entropic_risk_measure(x, a=self.a)

    def cash(self, x: jax.Array) -> jax.Array:
        # Analytic cash equivalent: -loss(pnl)
        return -self(x)


def _reference(x, a=1.0):
    xf = jnp.asarray(x, dtype=jnp.float32).reshape(x.shape[0], -1)
    ls = jax.scipy.special.logsumexp(-a * xf, axis=0)
    return ((ls - math.log(x.shape[0])) / a).reshape(x.shape[1:])


if __name__ == "__main__":
    key = jax.random.PRNGKey(0)

    # (N, *) input: N=8 samples of a (4, 16) profit-loss distribution.
    x = jax.random.normal(key, (8, 4, 16), dtype=jnp.float32)
    loss_mod = EntropicRiskMeasure(a=1.5)
    out = jax.block_until_ready(loss_mod(x))
    ref = _reference(x, a=1.5)
    assert out.shape == (4, 16)
    assert jnp.allclose(out, ref, atol=1e-5, rtol=1e-5), (out, ref)

    # Docstring example: loss(-arange(4.0)) == 2.0539
    x_doc = -jnp.arange(4.0)
    out_doc = jax.block_until_ready(EntropicRiskMeasure()(x_doc))
    assert out_doc.shape == ()
    assert jnp.allclose(out_doc, 2.0539, atol=1e-3), out_doc
    assert jnp.allclose(EntropicRiskMeasure().cash(x_doc), -2.0539, atol=1e-3)

    # Numerical stability: values that overflow a naive exp-mean in f32.
    x_big = -200.0 + jax.random.normal(jax.random.PRNGKey(1), (16, 8),
                                       dtype=jnp.float32)
    out_big = jax.block_until_ready(EntropicRiskMeasure(a=1.0)(x_big))
    ref_big = _reference(x_big, a=1.0)
    assert jnp.all(jnp.isfinite(out_big))
    assert jnp.allclose(out_big, ref_big, atol=1e-3, rtol=1e-5), (out_big, ref_big)

    # Native-dtype (bf16) DMA path with in-kernel f32 accumulation.
    x_bf = jax.random.normal(jax.random.PRNGKey(2), (32, 4, 16),
                             dtype=jnp.bfloat16)
    out_bf = jax.block_until_ready(EntropicRiskMeasure(a=0.7)(x_bf))
    ref_bf = _reference(x_bf, a=0.7)
    assert out_bf.shape == (4, 16)
    assert jnp.allclose(out_bf.astype(jnp.float32), ref_bf, atol=3e-2, rtol=3e-2)

    # Uneven shapes: masked remainder chunk + partial D tile.
    x_un = jax.random.normal(jax.random.PRNGKey(3), (37, 5, 11),
                             dtype=jnp.float32)
    out_un = jax.block_until_ready(EntropicRiskMeasure(a=2.0)(x_un))
    ref_un = _reference(x_un, a=2.0)
    assert out_un.shape == (5, 11)
    assert jnp.allclose(out_un, ref_un, atol=1e-5, rtol=1e-5)

    # Forced multi-block reduction (small tiles): unmasked steady-state blocks
    # + masked remainder block, scratch (m, s) carried across the N grid axis.
    x_mb = jax.random.normal(jax.random.PRNGKey(4), (150, 40), dtype=jnp.float32)
    out_mb = jax.block_until_ready(
        entropic_risk_measure(x_mb, a=1.2, tile_n=64, tile_d=128))
    ref_mb = _reference(x_mb, a=1.2)
    assert jnp.allclose(out_mb, ref_mb, atol=1e-5, rtol=1e-5)

    # Forced multi-block with an even split: fully unmasked path on all blocks.
    x_ev = jax.random.normal(jax.random.PRNGKey(5), (128, 40), dtype=jnp.float32)
    out_ev = jax.block_until_ready(
        entropic_risk_measure(x_ev, a=0.9, tile_n=64, tile_d=128))
    ref_ev = _reference(x_ev, a=0.9)
    assert jnp.allclose(out_ev, ref_ev, atol=1e-5, rtol=1e-5)

    print("KERNEL_OK")
</pallas_src>

<mosaic_0001>
module attributes {stable_mosaic.version = 11 : i64} {
  func.func @_erm_kernel(%arg0: i32, %arg1: i32, %arg2: memref<32x128xf32, #tpu.memory_space<vmem>>, %arg3: memref<1x128xf32, #tpu.memory_space<vmem>>, %arg4: memref<1x128xf32, #tpu.memory_space<vmem>>, %arg5: memref<1x128xf32, #tpu.memory_space<vmem>>) attributes {dimension_semantics = [#tpu.dimension_semantics<parallel>, #tpu.dimension_semantics<arbitrary>], iteration_bounds = array<i64: 1, 1>, scalar_prefetch = 0 : i64, scratch_operands = 2 : i64, tpu.core_type = #tpu.core_type<tc>, window_params = [{transform_indices = @transform_0, window_bounds = array<i64: 32, 128>}, {transform_indices = @transform_1, window_bounds = array<i64: 1, 128>}]} {
    %c0_i32 = arith.constant 0 : i32
    %0 = arith.cmpi eq, %arg1, %c0_i32 : i32
    %1 = arith.extui %0 : i1 to i32
    %c0_i32_0 = arith.constant 0 : i32
    %2 = arith.cmpi ne, %1, %c0_i32_0 : i32
    scf.if %2 {
      %cst_8 = arith.constant -3.40282347E+38 : f32
      %12 = vector.broadcast %cst_8 : f32 to vector<1x128xf32>
      %c0 = arith.constant 0 : index
      %c0_9 = arith.constant 0 : index
      %13 = vector.load %arg4[%c0, %c0_9] : memref<1x128xf32, #tpu.memory_space<vmem>>, vector<1x128xf32>
      tpu.vector_store %arg4[%c0, %c0_9], %12 {strides = array<i32>} : memref<1x128xf32, #tpu.memory_space<vmem>>, vector<1x128xf32>,
      %cst_10 = arith.constant 0.000000e+00 : f32
      %14 = vector.broadcast %cst_10 : f32 to vector<1x128xf32>
      %c0_11 = arith.constant 0 : index
      %c0_12 = arith.constant 0 : index
      %15 = vector.load %arg5[%c0_11, %c0_12] : memref<1x128xf32, #tpu.memory_space<vmem>>, vector<1x128xf32>
      tpu.vector_store %arg5[%c0_11, %c0_12], %14 {strides = array<i32>} : memref<1x128xf32, #tpu.memory_space<vmem>>, vector<1x128xf32>,
    } else {
    }
    %c0_i32_1 = arith.constant 0 : i32
    %3 = arith.cmpi slt, %arg1, %c0_i32_1 : i32
    %4 = arith.extui %3 : i1 to i32
    %cst = arith.constant -1.500000e+00 : f32
    %c0_i32_2 = arith.constant 0 : i32
    %5 = arith.cmpi ne, %4, %c0_i32_2 : i32
    scf.if %5 {
      %c0 = arith.constant 0 : index
      %c0_8 = arith.constant 0 : index
      %12 = vector.load %arg4[%c0, %c0_8] : memref<1x128xf32, #tpu.memory_space<vmem>>, vector<1x128xf32>
      %c0_9 = arith.constant 0 : index
      %c0_10 = arith.constant 0 : index
      %13 = vector.load %arg5[%c0_9, %c0_10] : memref<1x128xf32, #tpu.memory_space<vmem>>, vector<1x128xf32>
      %c0_i32_11 = arith.constant 0 : i32
      %c32_i32 = arith.constant 32 : i32
      %14 = arith.muli %c0_i32_11, %c32_i32 : i32
      %15 = tpu.assume_multiple %14, 32 : i32
      %16 = arith.index_cast %15 : i32 to index
      %c0_12 = arith.constant 0 : index
      %17 = vector.load %arg2[%16, %c0_12] : memref<32x128xf32, #tpu.memory_space<vmem>>, vector<32x128xf32>
      %18 = vector.broadcast %cst : f32 to vector<32x128xf32>
      %19 = arith.mulf %18, %17 : vector<32x128xf32>
      %cst_13 = arith.constant dense<0xFF800000> : vector<128xf32>
      %20 = vector.multi_reduction <maximumf>, %19, %cst_13 [0] : vector<32x128xf32> to vector<128xf32>
      %21 = vector.shape_cast %20 : vector<128xf32> to vector<1x128xf32>
      %22 = arith.maximumf %12, %21 : vector<1x128xf32>
      %23 = vector.broadcast %22 : vector<1x128xf32> to vector<32x128xf32>
      %24 = arith.subf %19, %23 : vector<32x128xf32>
      %25 = math.exp %24 : vector<32x128xf32>
      %cst_14 = arith.constant dense<0.000000e+00> : vector<128xf32>
      %26 = vector.multi_reduction <add>, %25, %cst_14 [0] : vector<32x128xf32> to vector<128xf32>
      %27 = vector.shape_cast %26 : vector<128xf32> to vector<1x128xf32>
      %28 = arith.subf %12, %22 : vector<1x128xf32>
      %29 = math.exp %28 : vector<1x128xf32>
      %30 = arith.mulf %13, %29 : vector<1x128xf32>
      %31 = arith.addf %30, %27 : vector<1x128xf32>
      %c1_i32 = arith.constant 1 : i32
      %c0_15 = arith.constant 0 : index
      %c0_16 = arith.constant 0 : index
      %32 = vector.load %arg4[%c0_15, %c0_16] : memref<1x128xf32, #tpu.memory_space<vmem>>, vector<1x128xf32>
      tpu.vector_store %arg4[%c0_15, %c0_16], %22 {strides = array<i32>} : memref<1x128xf32, #tpu.memory_space<vmem>>, vector<1x128xf32>,
      %c0_17 = arith.constant 0 : index
      %c0_18 = arith.constant 0 : index
      %33 = vector.load %arg5[%c0_17, %c0_18] : memref<1x128xf32, #tpu.memory_space<vmem>>, vector<1x128xf32>
      tpu.vector_store %arg5[%c0_17, %c0_18], %31 {strides = array<i32>} : memref<1x128xf32, #tpu.memory_space<vmem>>, vector<1x128xf32>,
    } else {
    }
    %c0_i32_3 = arith.constant 0 : i32
    %6 = arith.cmpi eq, %arg1, %c0_i32_3 : i32
    %7 = arith.extui %6 : i1 to i32
    %cst_4 = arith.constant -1.500000e+00 : f32
    %c0_i32_5 = arith.constant 0 : i32
    %8 = arith.cmpi ne, %7, %c0_i32_5 : i32
    scf.if %8 {
      %c0 = arith.constant 0 : index
      %c0_8 = arith.constant 0 : index
      %12 = vector.load %arg4[%c0, %c0_8] : memref<1x128xf32, #tpu.memory_space<vmem>>, vector<1x128xf32>
      %c0_9 = arith.constant 0 : index
      %c0_10 = arith.constant 0 : index
      %13 = vector.load %arg5[%c0_9, %c0_10] : memref<1x128xf32, #tpu.memory_space<vmem>>, vector<1x128xf32>
      %c0_i32_11 = arith.constant 0 : i32
      %c32_i32 = arith.constant 32 : i32
      %14 = arith.muli %c0_i32_11, %c32_i32 : i32
      %15 = tpu.assume_multiple %14, 32 : i32
      %16 = arith.index_cast %15 : i32 to index
      %c0_12 = arith.constant 0 : index
      %17 = vector.load %arg2[%16, %c0_12] : memref<32x128xf32, #tpu.memory_space<vmem>>, vector<32x128xf32>
      %18 = vector.broadcast %cst_4 : f32 to vector<32x128xf32>
      %19 = arith.mulf %18, %17 : vector<32x128xf32>
      %20 = tpu.iota {dimensions = array<i32: 0>} : vector<32x1xi32>
      %c32_i32_13 = arith.constant 32 : i32
      %21 = arith.muli %arg1, %c32_i32_13 : i32
      %22 = vector.broadcast %21 : i32 to vector<32x1xi32>
      %23 = arith.addi %20, %22 : vector<32x1xi32>
      %c32_i32_14 = arith.constant 32 : i32
      %24 = arith.muli %c0_i32_11, %c32_i32_14 : i32
      %25 = vector.broadcast %24 : i32 to vector<32x1xi32>
      %26 = arith.addi %23, %25 : vector<32x1xi32>
      %c8_i32 = arith.constant 8 : i32
      %27 = vector.broadcast %c8_i32 : i32 to vector<32x1xi32>
      %28 = arith.cmpi slt, %26, %27 : vector<32x1xi32>
      %cst_15 = arith.constant -3.40282347E+38 : f32
      %29 = vector.shape_cast %28 : vector<32x1xi1> to vector<32x1xi1>
      %30 = vector.broadcast %29 : vector<32x1xi1> to vector<32x128xi1>
      %31 = vector.broadcast %cst_15 : f32 to vector<32x128xf32>
      %32 = arith.select %30, %19, %31 : vector<32x128xi1>, vector<32x128xf32>
      %cst_16 = arith.constant dense<0xFF800000> : vector<128xf32>
      %33 = vector.multi_reduction <maximumf>, %32, %cst_16 [0] : vector<32x128xf32> to vector<128xf32>
      %34 = vector.shape_cast %33 : vector<128xf32> to vector<1x128xf32>
      %35 = arith.maximumf %12, %34 : vector<1x128xf32>
      %36 = vector.broadcast %35 : vector<1x128xf32> to vector<32x128xf32>
      %37 = arith.subf %32, %36 : vector<32x128xf32>
      %38 = math.exp %37 : vector<32x128xf32>
      %cst_17 = arith.constant 0.000000e+00 : f32
      %39 = vector.shape_cast %28 : vector<32x1xi1> to vector<32x1xi1>
      %40 = vector.broadcast %39 : vector<32x1xi1> to vector<32x128xi1>
      %41 = vector.broadcast %cst_17 : f32 to vector<32x128xf32>
      %42 = arith.select %40, %38, %41 : vector<32x128xi1>, vector<32x128xf32>
      %cst_18 = arith.constant dense<0.000000e+00> : vector<128xf32>
      %43 = vector.multi_reduction <add>, %42, %cst_18 [0] : vector<32x128xf32> to vector<128xf32>
      %44 = vector.shape_cast %43 : vector<128xf32> to vector<1x128xf32>
      %45 = arith.subf %12, %35 : vector<1x128xf32>
      %46 = math.exp %45 : vector<1x128xf32>
      %47 = arith.mulf %13, %46 : vector<1x128xf32>
      %48 = arith.addf %47, %44 : vector<1x128xf32>
      %c1_i32 = arith.constant 1 : i32
      %c0_19 = arith.constant 0 : index
      %c0_20 = arith.constant 0 : index
      %49 = vector.load %arg4[%c0_19, %c0_20] : memref<1x128xf32, #tpu.memory_space<vmem>>, vector<1x128xf32>
      tpu.vector_store %arg4[%c0_19, %c0_20], %35 {strides = array<i32>} : memref<1x128xf32, #tpu.memory_space<vmem>>, vector<1x128xf32>,
      %c0_21 = arith.constant 0 : index
      %c0_22 = arith.constant 0 : index
      %50 = vector.load %arg5[%c0_21, %c0_22] : memref<1x128xf32, #tpu.memory_space<vmem>>, vector<1x128xf32>
      tpu.vector_store %arg5[%c0_21, %c0_22], %48 {strides = array<i32>} : memref<1x128xf32, #tpu.memory_space<vmem>>, vector<1x128xf32>,
    } else {
    }
    %c0_i32_6 = arith.constant 0 : i32
    %9 = arith.cmpi eq, %arg1, %c0_i32_6 : i32
    %10 = arith.extui %9 : i1 to i32
    %c0_i32_7 = arith.constant 0 : i32
    %11 = arith.cmpi ne, %10, %c0_i32_7 : i32
    scf.if %11 {
      %c0 = arith.constant 0 : index
      %c0_8 = arith.constant 0 : index
      %12 = vector.load %arg4[%c0, %c0_8] : memref<1x128xf32, #tpu.memory_space<vmem>>, vector<1x128xf32>
      %c0_9 = arith.constant 0 : index
      %c0_10 = arith.constant 0 : index
      %13 = vector.load %arg5[%c0_9, %c0_10] : memref<1x128xf32, #tpu.memory_space<vmem>>, vector<1x128xf32>
      %14 = math.log %13 : vector<1x128xf32>
      %15 = arith.addf %12, %14 : vector<1x128xf32>
      %cst_11 = arith.constant 2.07944155 : f32
      %16 = vector.broadcast %cst_11 : f32 to vector<1x128xf32>
      %17 = arith.subf %15, %16 : vector<1x128xf32>
      %cst_12 = arith.constant 0.666666686 : f32
      %18 = vector.broadcast %cst_12 : f32 to vector<1x128xf32>
      %19 = arith.mulf %17, %18 : vector<1x128xf32>
      %c0_13 = arith.constant 0 : index
      %c0_14 = arith.constant 0 : index
      %20 = vector.load %arg3[%c0_13, %c0_14] : memref<1x128xf32, #tpu.memory_space<vmem>>, vector<1x128xf32>
      tpu.vector_store %arg3[%c0_13, %c0_14], %19 {strides = array<i32>} : memref<1x128xf32, #tpu.memory_space<vmem>>, vector<1x128xf32>,
    } else {
    }
    return
  }
  func.func @transform_0(%arg0: i32, %arg1: i32) -> (i32, i32) {
    %c0_i32 = arith.constant 0 : i32
    return %arg1, %arg0 : i32, i32
  }
  func.func @transform_1(%arg0: i32, %arg1: i32) -> (i32, i32) {
    %c0_i32 = arith.constant 0 : i32
    %c0_i32_0 = arith.constant 0 : i32
    return %c0_i32, %arg0 : i32, i32
  }
}

</mosaic_0001>

<llo_original>
// kernel: tpu_custom_call.1
$region0: #{tpu_custom_call.1}
  #allocation0 [shape = 'u32[]', space=smem, size = 0x4, offset = 0x4, fixed_abs, tag = 'smem constant byte address 0x4 - core index']
  #allocation1 [shape = 'u32[144,128]{1,0:T(1,128)}', space=vmem, size = 0x12000, scoped, tag = 'internal scratch']
  #allocation2 [shape = 'f32[1,128]{1,0:T(1,128)}', space=vmem, size = 0x200, scoped, tag = 'scratch operand']
  #allocation3 [shape = 'f32[1,128]{1,0:T(1,128)}', space=vmem, size = 0x200, scoped, tag = 'scratch operand']
  %s0 = inlined_call_operand.hbm [shape: f32[8,64], index: 0, kind: input, shape index: {}]
  %s1 = inlined_call_operand.hbm [shape: f32[1,64], index: 1, kind: output, shape index: {}]
  %s2 = sld [smem:[#allocation0]]
  $region30: #{tpu_custom_call.1} parent=0
    _
  %s4 = ssub.s32 1, %s2
  %s5 = scalar_select 0, %s4, %s2
  $region1: #{tpu_custom_call.1} parent=0
    #allocation4 [shape = 'u8[16384]{0}', space=vmem, size = 0x4000, scoped, tag = 'input window, operand 0, single buffered']
    #allocation5 [shape = 's32[1]{0}', space=sflag, size = 0x4, scoped, tag = 'scoped memory for tpu_custom_call.1']
    #allocation6 [shape = 's32[1]{0}', space=sflag, size = 0x4, scoped, tag = 'scoped memory for tpu_custom_call.1']
    #allocation7 [shape = 'u8[512]{0}', space=vmem, size = 0x400, scoped, tag = 'output window, operand 0, single buffered']
    %6 = vsyncpa [#allocation5], 0
    %7 = vsyncpa [#allocation6], 0
    // Predicated region
    $region2: #{tpu_custom_call.1} parent=1 // pred_check
      _
    $region3: #{tpu_custom_call.1} parent=1 // pred_check_branch
      %9 = sbr.rel (0) target = $region5
    $region4: #{tpu_custom_call.1} parent=1 // pred_region
      %s11 = ssub.s32 512, 128
      %12 = vsyncadd [#allocation5], %s11
      %s13 = sshll.u32 [#allocation4], 4
      %s14 = int_to_ptr.vmem [resolvable:$true] %s13
      %19 = dma.hbm_to_vmem [thread:$0]  %s0, 128, %s14, [#allocation5], 128, 128, 8
    $region5: #{tpu_custom_call.1} parent=1 // pred_fallthru
      _
    // Predicated region
    $region6: #{tpu_custom_call.1} parent=1 // pred_check
      _
    $region7: #{tpu_custom_call.1} parent=1 // pred_check_branch
      %21 = sbr.rel (0) target = $region9
    $region8: #{tpu_custom_call.1} parent=1 // pred_region
      %22 = dma.done [#allocation5], 512
    $region9: #{tpu_custom_call.1} parent=1 // pred_fallthru
      _
    %p23 = scmp.eq.s32.totalorder 0, 0
    // Predicated region
    $region10: #{tpu_custom_call.1} parent=1 // pred_check
      %p24 = pneg %p23
    $region11: #{tpu_custom_call.1} parent=1 // pred_check_branch
      %26 = sbr.rel (%p24) target = $region13
    $region12: #{tpu_custom_call.1} parent=1 // pred_region
      %27 = vst [vmem:[#allocation2] sm:$0x1] -3.4028235e+38
      %28 = vst [vmem:[#allocation3] sm:$0x1] 0.0
    $region13: #{tpu_custom_call.1} parent=1 // pred_fallthru
      _
    %p29 = scmp.lt.s32.totalorder 0, 0
    // Predicated region
    $region14: #{tpu_custom_call.1} parent=1 // pred_check
      %p30 = pneg %p29
    $region15: #{tpu_custom_call.1} parent=1 // pred_check_branch
      %32 = sbr.rel (%p30) target = $region17
    $region16: #{tpu_custom_call.1} parent=1 // pred_region
      %v33 = vld [vmem:[#allocation2] sm:$0x1]
      %v34 = vld [vmem:[#allocation3] sm:$0x1]
      %v35 = vld [vmem:[#allocation4] sm:$0xff]
      %v36 = vld [vmem:[#allocation4 + $0x8] sm:$0xff]
      %v37 = vld [vmem:[#allocation4 + $0x10] sm:$0xff]
      %v38 = vld [vmem:[#allocation4 + $0x18] sm:$0xff]
      %v39 = vmul.f32 %v35, -1.5
      %v40 = vmul.f32 %v36, -1.5
      %v41 = vmul.f32 %v37, -1.5
      %v42 = vmul.f32 %v38, -1.5
      %v43 = vmax.f32 %v39, %v40
      %v44 = vmax.f32 %v41, %v42
      %v45 = vmax.f32 %v43, %v44
      %v46 = vrot.slane %v45, 4
      %v47 = vmax.f32 %v45, %v46
      %v48 = vrot.slane %v47, 2
      %v49 = vmax.f32 %v47, %v48
      %v50 = vrot.slane %v49, 1
      %v51 = vmax.f32 %v49, %v50
      %v52 = vmax.f32 %v33, %v51
      %v54 = vlaneseq
      %v55 = vshrl.u32 %v54, 7
      %v56 = vsub.s32 0, %v55
      %v57 = vrot.slane %v52, %v56
      %v59 = vsub.f32 %v39, %v57
      %v60 = vsub.f32 %v40, %v57
      %v61 = vsub.f32 %v41, %v57
      %v62 = vsub.f32 %v42, %v57
      %v63 = vmul.f32 %v59, 1.442695
      %v64 = vpow.pop %v63
      %v65 = vmul.f32 %v60, 1.442695
      %v66 = vpow.pop %v65
      %v67 = vmul.f32 %v61, 1.442695
      %v68 = vpow.pop %v67
      %v69 = vmul.f32 %v62, 1.442695
      %v70 = vpow.pop %v69
      %v71 = vadd.f32 %v64, %v66
      %v72 = vadd.f32 %v71, %v68
      %v73 = vadd.f32 %v72, %v70
      %v74 = vrot.slane %v73, 4
      %v75 = vadd.f32 %v73, %v74
      %v76 = vrot.slane %v75, 2
      %v77 = vadd.f32 %v75, %v76
      %v78 = vrot.slane %v77, 1
      %v79 = vadd.f32 %v77, %v78
      %v80 = vsub.f32 %v33, %v52
      %v81 = vmul.f32 %v80, 1.442695
      %v82 = vpow.pop %v81
      %v83 = vmul.f32 %v34, %v82
      %v84 = vadd.f32 %v83, %v79
      %85 = vst [vmem:[#allocation2] sm:$0x1] %v52
      %86 = vst [vmem:[#allocation3] sm:$0x1] %v84
    $region17: #{tpu_custom_call.1} parent=1 // pred_fallthru
      _
    // Predicated region
    $region18: #{tpu_custom_call.1} parent=1 // pred_check
      %p87 = pneg %p23
    $region19: #{tpu_custom_call.1} parent=1 // pred_check_branch
      %89 = sbr.rel (%p87) target = $region21
    $region20: #{tpu_custom_call.1} parent=1 // pred_region
      %v90 = vld [vmem:[#allocation2] sm:$0x1]
      %v91 = vld [vmem:[#allocation3] sm:$0x1]
      %v92 = vld [vmem:[#allocation4] sm:$0xff]
      %v93 = vld [vmem:[#allocation4 + $0x8] sm:$0xff]
      %v94 = vld [vmem:[#allocation4 + $0x10] sm:$0xff]
      %v95 = vld [vmem:[#allocation4 + $0x18] sm:$0xff]
      %v96 = vmul.f32 %v92, -1.5
      %v97 = vmul.f32 %v93, -1.5
      %v98 = vmul.f32 %v94, -1.5
      %v99 = vmul.f32 %v95, -1.5
      %v100 = vlaneseq
      %v101 = vshrl.u32 %v100, 7
      %v102 = vadd.s32 %v101, 8
      %v103 = vadd.s32 %v101, 16
      %v104 = vadd.s32 %v101, 24
      %s105 = smul.u32 0, 32
      %v106 = vstv %s105
      %v107 = vadd.s32 %v101, %v106
      %v108 = vadd.s32 %v102, %v106
      %v109 = vadd.s32 %v103, %v106
      %v110 = vadd.s32 %v104, %v106
      %vm111 = vcmp.lt.s32.totalorder %v107, 8
      %vm112 = vcmp.lt.s32.totalorder %v108, 8
      %vm113 = vcmp.lt.s32.totalorder %v109, 8
      %vm114 = vcmp.lt.s32.totalorder %v110, 8
      %v115 = vsel %vm111, 1, 0
      %v116 = vsel %vm112, 1, 0
      %v117 = vsel %vm113, 1, 0
      %v118 = vsel %vm114, 1, 0
      %vm119 = vcmp.eq.s32.totalorder %v115, 1
      %vm120 = vcmp.eq.s32.totalorder %v116, 1
      %vm121 = vcmp.eq.s32.totalorder %v117, 1
      %vm122 = vcmp.eq.s32.totalorder %v118, 1
      %v123 = vsel %vm119, %v96, -3.4028235e+38
      %v124 = vsel %vm120, %v97, -3.4028235e+38
      %v125 = vsel %vm121, %v98, -3.4028235e+38
      %v126 = vsel %vm122, %v99, -3.4028235e+38
      %v127 = vmax.f32 %v123, %v124
      %v128 = vmax.f32 %v125, %v126
      %v129 = vmax.f32 %v127, %v128
      %v130 = vrot.slane %v129, 4
      %v131 = vmax.f32 %v129, %v130
      %v132 = vrot.slane %v131, 2
      %v133 = vmax.f32 %v131, %v132
      %v134 = vrot.slane %v133, 1
      %v135 = vmax.f32 %v133, %v134
      %v136 = vmax.f32 %v90, %v135
      %v138 = vlaneseq
      %v139 = vshrl.u32 %v138, 7
      %v140 = vsub.s32 0, %v139
      %v141 = vrot.slane %v136, %v140
      %v143 = vsub.f32 %v123, %v141
      %v144 = vsub.f32 %v124, %v141
      %v145 = vsub.f32 %v125, %v141
      %v146 = vsub.f32 %v126, %v141
      %v147 = vmul.f32 %v143, 1.442695
      %v148 = vpow.pop %v147
      %v149 = vmul.f32 %v144, 1.442695
      %v150 = vpow.pop %v149
      %v151 = vmul.f32 %v145, 1.442695
      %v152 = vpow.pop %v151
      %v153 = vmul.f32 %v146, 1.442695
      %v154 = vpow.pop %v153
      %v155 = vsel %vm119, %v148, 0.0
      %v156 = vsel %vm120, %v150, 0.0
      %v157 = vsel %vm121, %v152, 0.0
      %v158 = vsel %vm122, %v154, 0.0
      %v159 = vadd.f32 %v155, %v156
      %v160 = vadd.f32 %v159, %v157
      %v161 = vadd.f32 %v160, %v158
      %v162 = vrot.slane %v161, 4
      %v163 = vadd.f32 %v161, %v162
      %v164 = vrot.slane %v163, 2
      %v165 = vadd.f32 %v163, %v164
      %v166 = vrot.slane %v165, 1
      %v167 = vadd.f32 %v165, %v166
      %v168 = vsub.f32 %v90, %v136
      %v169 = vmul.f32 %v168, 1.442695
      %v170 = vpow.pop %v169
      %v171 = vmul.f32 %v91, %v170
      %v172 = vadd.f32 %v171, %v167
      %173 = vst [vmem:[#allocation2] sm:$0x1] %v136
      %174 = vst [vmem:[#allocation3] sm:$0x1] %v172
      %v175 = vld [vmem:[#allocation2] sm:$0x1]
      %v176 = vld [vmem:[#allocation3] sm:$0x1]
      %v177 = vlog2.pop %v176
      %v178 = vmul.f32 %v177, 0.6931472
      %v179 = vadd.f32 %v175, %v178
      %v180 = vsub.f32 %v179, 2.0794415
      %v181 = vmul.f32 %v180, 0.6666667
      %182 = vst [vmem:[#allocation7] sm:$0x1] %v181
    $region21: #{tpu_custom_call.1} parent=1 // pred_fallthru
      _
    // Predicated region
    $region22: #{tpu_custom_call.1} parent=1 // pred_check
      _
    $region23: #{tpu_custom_call.1} parent=1 // pred_check_branch
      %184 = sbr.rel (0) target = $region25
    $region24: #{tpu_custom_call.1} parent=1 // pred_region
      %s186 = ssub.s32 16, 16
      %187 = vsyncadd [#allocation6], %s186
      %s189 = sshll.u32 [#allocation7], 4
      %s190 = int_to_ptr.vmem [resolvable:$true] %s189
      %192 = dma.vmem_to_hbm [thread:$0]  %s190, 16, %s1, [#allocation6]
    $region25: #{tpu_custom_call.1} parent=1 // pred_fallthru
      _
    // Predicated region
    $region26: #{tpu_custom_call.1} parent=1 // pred_check
      _
    $region27: #{tpu_custom_call.1} parent=1 // pred_check_branch
      %194 = sbr.rel (0) target = $region29
    $region28: #{tpu_custom_call.1} parent=1 // pred_region
      %195 = dma.done [#allocation6], 16
    $region29: #{tpu_custom_call.1} parent=1 // pred_fallthru
      _
    %196 = vsyncpa [#allocation5], 1
    %197 = vsyncpa [#allocation6], 1

</llo_original>
